<compile_context>
chip_gen: v6e
topology: v6e:2x2x1
jax: 0.10.0
libtpu: 0.0.40
codegen_flags: <defaults>
</compile_context>

<pallas_src>
import jax
import jax.numpy as jnp
from jax.experimental import pallas as pl
from jax.experimental.pallas import tpu as pltpu

_LANES = 128
_MAX_BLOCK_ROWS = 8192                 # (8192, 128) f32 = 4 MiB per input tile
_VMEM_LIMIT_BYTES = 32 * 1024 * 1024   # room for 2 inputs x 2 buffers x 4 MiB


def _make_sq_sum_kernel(rows, block_rows, steps, num_splits, acc_rows):
    """Builds a kernel that accumulates sum((yhat - y)^2) into a resident
    (acc_rows, 128) output block (one block per parallel split).

    All sizing/raggedness is trace-time constant and closed over, so the
    compiler can constant-fold the mask away on the aligned path."""
    nb = num_splits * steps                 # total grid block slots
    need_mask = (rows % block_rows) != 0    # ragged last block?

    def fold(sq):
        # (block_rows, 128) -> (acc_rows, 128) via per-vreg VPU adds
        # (tile-aligned reshape of the sublane dim; no XLU, no copy).
        if acc_rows == block_rows:
            return sq
        return sq.reshape(block_rows // acc_rows, acc_rows, _LANES).sum(axis=0)

    def kernel(yhat_ref, y_ref, o_ref):
        i = pl.program_id(1)                # reduction ("arbitrary") axis

        @pl.when(i == 0)
        def _init():
            o_ref[...] = jnp.zeros_like(o_ref)

        d = yhat_ref[...].astype(jnp.float32) - y_ref[...].astype(jnp.float32)
        sq = d * d

        if need_mask:
            gidx = pl.program_id(0) * steps + i      # global block index
            is_tail = gidx == nb - 1

            @pl.when(jnp.logical_not(is_tail))
            def _full_block():
                o_ref[...] += fold(sq)

            @pl.when(is_tail)
            def _tail_block():
                # Keep this as a select (not multiply-by-mask) so garbage
                # Inf/NaN read past the logical end is discarded, not spread.
                row_idx = gidx * block_rows + jax.lax.broadcasted_iota(
                    jnp.int32, (block_rows, _LANES), 0)
                o_ref[...] += fold(jnp.where(row_idx < rows, sq, 0.0))
        else:
            o_ref[...] += fold(sq)

    return kernel


def _sq_diff_sum_2d(yhat2d, y2d):
    """Sum of squared differences over a (rows, 128) slab via Pallas."""
    rows = yhat2d.shape[0]

    block_rows = rows if rows <= _MAX_BLOCK_ROWS else _MAX_BLOCK_ROWS
    acc_rows = 8 if block_rows % 8 == 0 else block_rows

    nb = pl.cdiv(rows, block_rows)
    # Split across both TensorCores (v7x) when the block count splits evenly;
    # on 1-TC chips the extra leading axis is just an outer loop.
    num_splits = 2 if (nb >= 2 and nb % 2 == 0) else 1
    steps = nb // num_splits

    kernel = _make_sq_sum_kernel(rows, block_rows, steps, num_splits, acc_rows)

    in_map = lambda c, i: (c * steps + i, 0)
    out_map = lambda c, i: (c, 0)

    partials = pl.pallas_call(
        kernel,
        out_shape=jax.ShapeDtypeStruct((num_splits * acc_rows, _LANES),
                                       jnp.float32),
        grid_spec=pltpu.PrefetchScalarGridSpec(
            num_scalar_prefetch=0,
            grid=(num_splits, steps),
            in_specs=[
                pl.BlockSpec((block_rows, _LANES), in_map),
                pl.BlockSpec((block_rows, _LANES), in_map),
            ],
            out_specs=pl.BlockSpec((acc_rows, _LANES), out_map),
        ),
        compiler_params=pltpu.CompilerParams(
            dimension_semantics=("parallel", "arbitrary"),
            vmem_limit_bytes=_VMEM_LIMIT_BYTES,
        ),
    )(yhat2d, y2d)

    # Tiny final reduce over at most 2 * 8 * 128 partial sums.
    return jnp.sum(partials)


def rmse_loss(yhat: jax.Array, y: jax.Array) -> jax.Array:
    """Equivalent of torch.sqrt(nn.MSELoss()(yhat, y)) — returns a scalar."""
    assert yhat.shape == y.shape, "yhat and y must have the same shape"
    n_elem = yhat.size
    if n_elem == 0:
        # Matches 0/0 semantics of mean over an empty tensor.
        return jnp.float32(jnp.nan)

    yhat_flat = jnp.ravel(yhat)
    y_flat = jnp.ravel(y)

    rows = n_elem // _LANES
    n_main = rows * _LANES
    rem = n_elem - n_main

    total = jnp.float32(0.0)

    if rows > 0:
        # Lane-aligned prefix through the kernel.  When rem == 0 (common case)
        # this reshape is a free metadata op; no jnp.pad O(N) copy ever.
        yhat2d = yhat_flat[:n_main].reshape(rows, _LANES)
        y2d = y_flat[:n_main].reshape(rows, _LANES)
        total = total + _sq_diff_sum_2d(yhat2d, y2d)

    if rem:
        # <128-element remainder: negligible jnp fix-up instead of padding.
        d_tail = (yhat_flat[n_main:].astype(jnp.float32)
                  - y_flat[n_main:].astype(jnp.float32))
        total = total + jnp.sum(d_tail * d_tail)

    # Divide + sqrt hoisted out of the kernel (count-agnostic kernel).
    return jnp.sqrt(total / jnp.float32(n_elem))


if __name__ == "__main__":
    key = jax.random.PRNGKey(0)

    # Main check: small NCHW-style predictions vs. targets (lane-aligned).
    k1, k2, k3, k4 = jax.random.split(key, 4)
    shape = (2, 4, 16, 16)
    yhat = jax.random.normal(k1, shape, dtype=jnp.float32)
    y = jax.random.normal(k2, shape, dtype=jnp.float32)

    loss = rmse_loss(yhat, y)
    jax.block_until_ready(loss)
    ref = jnp.sqrt(jnp.mean((yhat - y) ** 2))
    assert jnp.allclose(loss, ref, rtol=1e-5, atol=1e-6), (loss, ref)

    # Extra check: ragged element count (exercises remainder fix-up path).
    shape2 = (7, 371)  # 2597 elements = 20 full lanes + 37 remainder
    yhat2 = jax.random.normal(k3, shape2, dtype=jnp.float32)
    y2 = jax.random.normal(k4, shape2, dtype=jnp.float32)
    loss2 = rmse_loss(yhat2, y2)
    jax.block_until_ready(loss2)
    ref2 = jnp.sqrt(jnp.mean((yhat2 - y2) ** 2))
    assert jnp.allclose(loss2, ref2, rtol=1e-5, atol=1e-6), (loss2, ref2)

    print("KERNEL_OK")
</pallas_src>

<mosaic_0001>
module attributes {stable_mosaic.version = 11 : i64} {
  func.func @kernel(%arg0: i32, %arg1: i32, %arg2: memref<16x128xf32, #tpu.memory_space<vmem>>, %arg3: memref<16x128xf32, #tpu.memory_space<vmem>>, %arg4: memref<8x128xf32, #tpu.memory_space<vmem>>) attributes {dimension_semantics = [#tpu.dimension_semantics<parallel>, #tpu.dimension_semantics<arbitrary>], iteration_bounds = array<i64: 1, 1>, scalar_prefetch = 0 : i64, scratch_operands = 0 : i64, tpu.core_type = #tpu.core_type<tc>, window_params = [{transform_indices = @transform_0, window_bounds = array<i64: 16, 128>}, {transform_indices = @transform_1, window_bounds = array<i64: 16, 128>}, {transform_indices = @transform_2, window_bounds = array<i64: 8, 128>}]} {
    %c0_i32 = arith.constant 0 : i32
    %0 = arith.cmpi eq, %arg1, %c0_i32 : i32
    %1 = arith.extui %0 : i1 to i32
    %c0_i32_0 = arith.constant 0 : i32
    %2 = arith.cmpi ne, %1, %c0_i32_0 : i32
    scf.if %2 {
      %cst_8 = arith.constant 0.000000e+00 : f32
      %12 = vector.broadcast %cst_8 : f32 to vector<8x128xf32>
      %c0_9 = arith.constant 0 : index
      %c0_10 = arith.constant 0 : index
      %13 = vector.load %arg4[%c0_9, %c0_10] : memref<8x128xf32, #tpu.memory_space<vmem>>, vector<8x128xf32>
      tpu.vector_store %arg4[%c0_9, %c0_10], %12 {strides = array<i32>} : memref<8x128xf32, #tpu.memory_space<vmem>>, vector<8x128xf32>,
    } else {
    }
    %c0 = arith.constant 0 : index
    %c0_1 = arith.constant 0 : index
    %3 = vector.load %arg2[%c0, %c0_1] : memref<16x128xf32, #tpu.memory_space<vmem>>, vector<16x128xf32>
    %c0_2 = arith.constant 0 : index
    %c0_3 = arith.constant 0 : index
    %4 = vector.load %arg3[%c0_2, %c0_3] : memref<16x128xf32, #tpu.memory_space<vmem>>, vector<16x128xf32>
    %5 = arith.subf %3, %4 : vector<16x128xf32>
    %6 = arith.mulf %5, %5 : vector<16x128xf32>
    %c0_4 = arith.constant 0 : index
    %c0_5 = arith.constant 0 : index
    %7 = vector.load %arg4[%c0_4, %c0_5] : memref<8x128xf32, #tpu.memory_space<vmem>>, vector<8x128xf32>
    %8 = vector.shape_cast %6 : vector<16x128xf32> to vector<2x8x128xf32>
    %cst = arith.constant dense<0.000000e+00> : vector<8x128xf32>
    %9 = vector.multi_reduction <add>, %8, %cst [0] : vector<2x8x128xf32> to vector<8x128xf32>
    %10 = arith.addf %7, %9 : vector<8x128xf32>
    %c0_6 = arith.constant 0 : index
    %c0_7 = arith.constant 0 : index
    %11 = vector.load %arg4[%c0_6, %c0_7] : memref<8x128xf32, #tpu.memory_space<vmem>>, vector<8x128xf32>
    tpu.vector_store %arg4[%c0_6, %c0_7], %10 {strides = array<i32>} : memref<8x128xf32, #tpu.memory_space<vmem>>, vector<8x128xf32>,
    return
  }
  func.func @transform_0(%arg0: i32, %arg1: i32) -> (i32, i32) {
    %c1_i32 = arith.constant 1 : i32
    %0 = arith.muli %arg0, %c1_i32 : i32
    %1 = arith.addi %0, %arg1 : i32
    %c0_i32 = arith.constant 0 : i32
    %c0_i32_0 = arith.constant 0 : i32
    return %1, %c0_i32 : i32, i32
  }
  func.func @transform_1(%arg0: i32, %arg1: i32) -> (i32, i32) {
    %c1_i32 = arith.constant 1 : i32
    %0 = arith.muli %arg0, %c1_i32 : i32
    %1 = arith.addi %0, %arg1 : i32
    %c0_i32 = arith.constant 0 : i32
    %c0_i32_0 = arith.constant 0 : i32
    return %1, %c0_i32 : i32, i32
  }
  func.func @transform_2(%arg0: i32, %arg1: i32) -> (i32, i32) {
    %c0_i32 = arith.constant 0 : i32
    %c0_i32_0 = arith.constant 0 : i32
    return %arg0, %c0_i32 : i32, i32
  }
}

</mosaic_0001>

<llo_original>
// kernel: tpu_custom_call.1
$region0: #{tpu_custom_call.1}
  #allocation0 [shape = 'u32[]', space=smem, size = 0x4, offset = 0x4, fixed_abs, tag = 'smem constant byte address 0x4 - core index']
  #allocation1 [shape = 'u32[144,128]{1,0:T(1,128)}', space=vmem, size = 0x12000, scoped, tag = 'internal scratch']
  %s0 = inlined_call_operand.hbm [shape: f32[16,128], index: 0, kind: input, shape index: {}]
  %s1 = inlined_call_operand.hbm [shape: f32[16,128], index: 1, kind: input, shape index: {}]
  %s2 = inlined_call_operand.hbm [shape: f32[8,128], index: 2, kind: output, shape index: {}]
  %s3 = sld [smem:[#allocation0]]
  $region30: #{tpu_custom_call.1} parent=0
    _
  %s5 = ssub.s32 1, %s3
  %s6 = scalar_select 0, %s5, %s3
  $region1: #{tpu_custom_call.1} parent=0
    #allocation2 [shape = 'u8[8192]{0}', space=vmem, size = 0x2000, scoped, tag = 'input window, operand 0, single buffered']
    #allocation3 [shape = 's32[1]{0}', space=sflag, size = 0x4, scoped, tag = 'scoped memory for tpu_custom_call.1']
    #allocation4 [shape = 's32[1]{0}', space=sflag, size = 0x4, scoped, tag = 'scoped memory for tpu_custom_call.1']
    #allocation5 [shape = 'u8[8192]{0}', space=vmem, size = 0x2000, scoped, tag = 'input window, operand 1, single buffered']
    #allocation6 [shape = 's32[1]{0}', space=sflag, size = 0x4, scoped, tag = 'scoped memory for tpu_custom_call.1']
    #allocation7 [shape = 'u8[4096]{0}', space=vmem, size = 0x1000, scoped, tag = 'output window, operand 0, single buffered']
    %7 = vsyncpa [#allocation3], 0
    %8 = vsyncpa [#allocation6], 0
    %9 = vsyncpa [#allocation4], 0
    // Predicated region
    $region2: #{tpu_custom_call.1} parent=1 // pred_check
      _
    $region3: #{tpu_custom_call.1} parent=1 // pred_check_branch
      %11 = sbr.rel (0) target = $region5
    $region4: #{tpu_custom_call.1} parent=1 // pred_region
      %s12 = sadd.s32 0, 0
      %s13 = smul.u32 2, %s12
      %s15 = ssub.s32 256, 256
      %16 = vsyncadd [#allocation3], %s15
      %s17 = smul.addr %s13, 128
      %s18 = scalar_lea.hbm %s0, %s17
      %s19 = sshll.u32 [#allocation2], 4
      %s20 = int_to_ptr.vmem [resolvable:$true] %s19
      %25 = dma.hbm_to_vmem [thread:$0]  %s18, 256, %s20, [#allocation3], 128, 128, 8
    $region5: #{tpu_custom_call.1} parent=1 // pred_fallthru
      _
    // Predicated region
    $region6: #{tpu_custom_call.1} parent=1 // pred_check
      _
    $region7: #{tpu_custom_call.1} parent=1 // pred_check_branch
      %27 = sbr.rel (0) target = $region9
    $region8: #{tpu_custom_call.1} parent=1 // pred_region
      %s28 = sadd.s32 0, 0
      %s29 = smul.u32 2, %s28
      %s31 = ssub.s32 256, 256
      %32 = vsyncadd [#allocation6], %s31
      %s33 = smul.addr %s29, 128
      %s34 = scalar_lea.hbm %s1, %s33
      %s35 = sshll.u32 [#allocation5], 4
      %s36 = int_to_ptr.vmem [resolvable:$true] %s35
      %41 = dma.hbm_to_vmem [thread:$0]  %s34, 256, %s36, [#allocation6], 128, 128, 8
    $region9: #{tpu_custom_call.1} parent=1 // pred_fallthru
      _
    // Predicated region
    $region10: #{tpu_custom_call.1} parent=1 // pred_check
      _
    $region11: #{tpu_custom_call.1} parent=1 // pred_check_branch
      %43 = sbr.rel (0) target = $region13
    $region12: #{tpu_custom_call.1} parent=1 // pred_region
      %44 = dma.done [#allocation3], 256
    $region13: #{tpu_custom_call.1} parent=1 // pred_fallthru
      _
    // Predicated region
    $region14: #{tpu_custom_call.1} parent=1 // pred_check
      _
    $region15: #{tpu_custom_call.1} parent=1 // pred_check_branch
      %46 = sbr.rel (0) target = $region17
    $region16: #{tpu_custom_call.1} parent=1 // pred_region
      %47 = dma.done [#allocation6], 256
    $region17: #{tpu_custom_call.1} parent=1 // pred_fallthru
      _
    %s48 = sadd.s32 0, 0
    %s49 = smul.u32 2, %s48
    %s50 = sadd.s32 0, 0
    %s51 = smul.u32 2, %s50
    %p52 = scmp.eq.s32.totalorder 0, 0
    // Predicated region
    $region18: #{tpu_custom_call.1} parent=1 // pred_check
      %p53 = pneg %p52
    $region19: #{tpu_custom_call.1} parent=1 // pred_check_branch
      %55 = sbr.rel (%p53) target = $region21
    $region20: #{tpu_custom_call.1} parent=1 // pred_region
      %56 = vst [vmem:[#allocation7] sm:$0xff] 0.0
    $region21: #{tpu_custom_call.1} parent=1 // pred_fallthru
      _
    %v57 = vld [vmem:[#allocation2] sm:$0xff]
    %v58 = vld [vmem:[#allocation2 + $0x8] sm:$0xff]
    %v59 = vld [vmem:[#allocation5] sm:$0xff]
    %v60 = vld [vmem:[#allocation5 + $0x8] sm:$0xff]
    %v61 = vsub.f32 %v57, %v59
    %v62 = vsub.f32 %v58, %v60
    %v63 = vmul.f32 %v61, %v61
    %v64 = vmul.f32 %v62, %v62
    %v65 = vld [vmem:[#allocation7] sm:$0xff]
    %v66 = vadd.f32 %v63, %v64
    %v67 = vadd.f32 %v65, %v66
    %68 = vst [vmem:[#allocation7] sm:$0xff] %v67
    // Predicated region
    $region22: #{tpu_custom_call.1} parent=1 // pred_check
      _
    $region23: #{tpu_custom_call.1} parent=1 // pred_check_branch
      %70 = sbr.rel (0) target = $region25
    $region24: #{tpu_custom_call.1} parent=1 // pred_region
      %s72 = ssub.s32 128, 128
      %73 = vsyncadd [#allocation4], %s72
      %s75 = sshll.u32 [#allocation7], 4
      %s76 = int_to_ptr.vmem [resolvable:$true] %s75
      %78 = dma.vmem_to_hbm [thread:$0]  %s76, 128, %s2, [#allocation4]
    $region25: #{tpu_custom_call.1} parent=1 // pred_fallthru
      _
    // Predicated region
    $region26: #{tpu_custom_call.1} parent=1 // pred_check
      _
    $region27: #{tpu_custom_call.1} parent=1 // pred_check_branch
      %80 = sbr.rel (0) target = $region29
    $region28: #{tpu_custom_call.1} parent=1 // pred_region
      %81 = dma.done [#allocation4], 128
    $region29: #{tpu_custom_call.1} parent=1 // pred_fallthru
      _
    %82 = vsyncpa [#allocation3], 1
    %83 = vsyncpa [#allocation6], 1
    %84 = vsyncpa [#allocation4], 1

</llo_original>
